<compile_context>
chip_gen: v5e
topology: v5e:2x2
jax: 0.10.0
libtpu: 0.0.40
codegen_flags: <defaults>
</compile_context>

<pallas_src>
import functools
import math

import jax
import jax.numpy as jnp
from jax.experimental import pallas as pl
from jax.experimental.pallas import tpu as pltpu

_GELU_C = 0.7978845608028654  # sqrt(2/pi)
_NEG_BIG = -1e30


def _pick_tile(total, preferred):
    """Largest multiple of 8 that divides `total` and is <= preferred; else `total`."""
    if preferred >= total:
        return total
    t = (preferred // 8) * 8
    while t >= 8:
        if total % t == 0:
            return t
        t -= 8
    return total


def _clamp_vmem(nbytes):
    # keep a sane scoped-VMEM request on every generation (v7x physical = 64 MiB)
    return int(min(max(nbytes, 16 * 1024 * 1024), 64 * 1024 * 1024))


# ----------------------------------------------------------------------------
# TEAdapterAttnProcessor kernel — grid = (B, S_tiles), heads via fori_loop.
# ----------------------------------------------------------------------------
def _attn_kernel(x_ref, adp_ref, wq_ref, wkv_ref, wo_ref, bo_ref, o_ref, acc_ref,
                 *, heads, head_dim, t_actual, inv_rescale):
    x = x_ref[0]          # (TS, C)     bf16 hidden-state tile (token-major)
    adp = adp_ref[0]      # (T_pad, A)  bf16 adapter text embeds (zero-padded)
    ts = x.shape[0]
    t_pad = adp.shape[0]

    acc_ref[...] = jnp.zeros_like(acc_ref)      # (TS, C) f32 accumulator

    # key-padding mask for the zero-padded adapter tokens (padded cols -> -inf-ish)
    if t_actual < t_pad:
        col_ids = jax.lax.broadcasted_iota(jnp.int32, (ts, t_pad), 1)
        pad_mask = col_ids >= t_actual
    else:
        pad_mask = None

    def _head_step(h, carry):
        wq_h = wq_ref[h]        # (C, d)   bf16, softmax scale folded in
        wkv_h = wkv_ref[h]      # (A, 2d)  bf16, [Wk^T | Wv^T]
        wo_h = wo_ref[h]        # (d, C)   bf16

        # per-head projections (bf16 MXU, f32 accumulation)
        q = jnp.dot(x, wq_h, preferred_element_type=jnp.float32)        # (TS, d)
        kv = jnp.dot(adp, wkv_h, preferred_element_type=jnp.float32)    # (T_pad, 2d)
        k = kv[:, :head_dim]
        v = kv[:, head_dim:]

        # scores (TS, T_pad) — bf16 operands, f32 result
        s = jax.lax.dot_general(
            q.astype(jnp.bfloat16), k.astype(jnp.bfloat16),
            (((1,), (1,)), ((), ())), preferred_element_type=jnp.float32)
        if pad_mask is not None:
            s = jnp.where(pad_mask, jnp.float32(_NEG_BIG), s)

        # f32 softmax statistics, exact normalization
        m = jnp.max(s, axis=-1, keepdims=True)
        p = jnp.exp(s - m)
        l = jnp.sum(p, axis=-1, keepdims=True)
        p = p * pl.reciprocal(l, approx=False)

        o_h = jnp.dot(p.astype(jnp.bfloat16), v.astype(jnp.bfloat16),
                      preferred_element_type=jnp.float32)                # (TS, d)
        # fold to_out[0] per head: lane-dense N = C, no concat
        acc_ref[...] += jnp.dot(o_h.astype(jnp.bfloat16), wo_h,
                                preferred_element_type=jnp.float32)      # (TS, C)
        return carry

    jax.lax.fori_loop(0, heads, _head_step, 0)

    out = acc_ref[...] + bo_ref[...] + x.astype(jnp.float32)   # bias + residual
    if inv_rescale != 1.0:                                      # static skip at 1.0
        out = out * inv_rescale
    o_ref[0] = out


def prepare_attn_params(params, *, heads):
    """One-time weight prep (call at init, NOT per forward): transpose the PyTorch
    (out,in) Linear weights, fold the softmax scale into Wq, fuse Wk/Wv, split every
    weight into per-head slabs, and cast to bf16 for the MXU."""
    wq = jnp.asarray(params["wq"], jnp.float32)   # (C, C)   attn.to_q.weight
    wk = jnp.asarray(params["wk"], jnp.float32)   # (C, A)   to_k_adapter.weight
    wv = jnp.asarray(params["wv"], jnp.float32)   # (C, A)   to_v_adapter.weight
    wo = jnp.asarray(params["wo"], jnp.float32)   # (C, C)   attn.to_out[0].weight
    bo = jnp.asarray(params["bo"], jnp.float32)   # (C,)     attn.to_out[0].bias
    C = wq.shape[0]
    A = wk.shape[1]
    assert C % heads == 0, "hidden_size must be divisible by heads"
    d = C // heads
    scale = 1.0 / math.sqrt(d)

    wq_h = (wq.T * scale).reshape(C, heads, d).transpose(1, 0, 2)       # (heads, C, d)
    wk_h = wk.T.reshape(A, heads, d).transpose(1, 0, 2)                 # (heads, A, d)
    wv_h = wv.T.reshape(A, heads, d).transpose(1, 0, 2)                 # (heads, A, d)
    wkv_h = jnp.concatenate([wk_h, wv_h], axis=-1)                      # (heads, A, 2d)
    wo_h = wo.T.reshape(heads, d, C)                                    # (heads, d, C)

    return {
        "wq_h": wq_h.astype(jnp.bfloat16),
        "wkv_h": wkv_h.astype(jnp.bfloat16),
        "wo_h": wo_h.astype(jnp.bfloat16),
        "bo": bo.reshape(1, C).astype(jnp.float32),
        "heads": heads,
        "head_dim": d,
    }


def te_adapter_attn_tokens(x_bsc, adapter_hidden_states, prepared, *,
                           rescale_output_factor=1.0, tile_s=512):
    """Fused TEAdapterAttnProcessor forward on token-major (B, S, C) hidden states
    (residual_connection=True, no spatial_norm / group_norm / norm_cross,
    attention_mask=None).  Preferred entry for a token-major surrounding model."""
    B, S, C = x_bsc.shape
    heads = prepared["heads"]
    d = prepared["head_dim"]
    Bt, T, A = adapter_hidden_states.shape
    assert Bt == B

    # pad adapter tokens once to a lane-dense multiple of 128 (masked in-kernel)
    t_pad = ((T + 127) // 128) * 128
    adp = adapter_hidden_states
    if t_pad != T:
        adp = jnp.pad(adp, ((0, 0), (0, t_pad - T), (0, 0)))
    adp = adp.astype(jnp.bfloat16)
    x = x_bsc.astype(jnp.bfloat16)

    ts = _pick_tile(S, tile_s)
    n_s = S // ts

    # scoped-VMEM request derived from the actual blocks (double-buffered) + headroom
    est = (2 * ts * C * 2 + 2 * t_pad * A * 2
           + 2 * heads * C * d * 2 + 2 * heads * A * 2 * d * 2 + 2 * heads * d * C * 2
           + 2 * C * 4 + 2 * ts * C * 4 + ts * C * 4)
    vmem_bytes = _clamp_vmem(4 * est)

    kernel = functools.partial(
        _attn_kernel, heads=heads, head_dim=d, t_actual=T,
        inv_rescale=1.0 / float(rescale_output_factor))

    return pl.pallas_call(
        kernel,
        out_shape=jax.ShapeDtypeStruct((B, S, C), jnp.float32),
        grid_spec=pltpu.PrefetchScalarGridSpec(
            num_scalar_prefetch=0,
            grid=(B, n_s),
            in_specs=[
                pl.BlockSpec((1, ts, C), lambda b, s: (b, s, 0)),        # x tile
                pl.BlockSpec((1, t_pad, A), lambda b, s: (b, 0, 0)),     # adapter embeds
                pl.BlockSpec((heads, C, d), lambda b, s: (0, 0, 0)),     # Wq^T per head
                pl.BlockSpec((heads, A, 2 * d), lambda b, s: (0, 0, 0)), # [Wk|Wv]^T per head
                pl.BlockSpec((heads, d, C), lambda b, s: (0, 0, 0)),     # Wo^T per head
                pl.BlockSpec((1, C), lambda b, s: (0, 0)),               # to_out bias
            ],
            out_specs=pl.BlockSpec((1, ts, C), lambda b, s: (b, s, 0)),
            scratch_shapes=[pltpu.VMEM((ts, C), jnp.float32)],           # per-tile acc
        ),
        compiler_params=pltpu.CompilerParams(
            dimension_semantics=("parallel", "parallel"),
            vmem_limit_bytes=vmem_bytes),
    )(x, adp, prepared["wq_h"], prepared["wkv_h"], prepared["wo_h"], prepared["bo"])


def te_adapter_attn_processor(hidden_states_nchw, adapter_hidden_states, prepared, *,
                              rescale_output_factor=1.0, tile_s=512):
    """NCHW drop-in wrapper (matches the PyTorch 4-D input path).  In a JAX model keep
    everything token-major and call te_adapter_attn_tokens directly to avoid the two
    HBM transpose round trips."""
    B, C, H, W = hidden_states_nchw.shape
    S = H * W
    x = hidden_states_nchw.reshape(B, C, S).transpose(0, 2, 1)   # .view().transpose(1,2)
    out = te_adapter_attn_tokens(x, adapter_hidden_states, prepared,
                                 rescale_output_factor=rescale_output_factor,
                                 tile_s=tile_s)
    return out.transpose(0, 2, 1).reshape(B, C, H, W)            # .transpose(-1,-2).reshape


# ----------------------------------------------------------------------------
# TEAdapterCaptionProjection kernel: linear_1 -> gelu(tanh) -> linear_2
# (active-adapter branch; M-tiled over the flattened (B*T, A) slab)
# ----------------------------------------------------------------------------
def _caption_proj_kernel(x_ref, w1_ref, b1_ref, w2_ref, b2_ref, o_ref):
    x = x_ref[...]                                                        # (TM, A) bf16
    h = jnp.dot(x, w1_ref[...], preferred_element_type=jnp.float32) + b1_ref[...]
    # GELU tanh approximation (PixArt act_1), f32
    h = 0.5 * h * (1.0 + jnp.tanh(_GELU_C * (h + 0.044715 * h * h * h)))
    o_ref[...] = (jnp.dot(h.astype(jnp.bfloat16), w2_ref[...],
                          preferred_element_type=jnp.float32) + b2_ref[...])


def prepare_caption_proj_params(params):
    Dp = params["w1"].shape[0]
    D2 = params["w2"].shape[0]
    return {
        "w1_t": jnp.asarray(params["w1"]).T.astype(jnp.bfloat16),   # (A, Dp)
        "b1": jnp.asarray(params["b1"]).reshape(1, Dp).astype(jnp.float32),
        "w2_t": jnp.asarray(params["w2"]).T.astype(jnp.bfloat16),   # (Dp, D2)
        "b2": jnp.asarray(params["b2"]).reshape(1, D2).astype(jnp.float32),
    }


def te_adapter_caption_projection(adapter_hidden_states, prepared, *, tile_m=256):
    B, T, A = adapter_hidden_states.shape
    Dp = prepared["w1_t"].shape[1]
    D2 = prepared["w2_t"].shape[1]
    M = B * T
    x2d = adapter_hidden_states.reshape(M, A).astype(jnp.bfloat16)

    tm = min(tile_m, M)
    tm = ((tm + 7) // 8) * 8
    m_pad = ((M + tm - 1) // tm) * tm
    if m_pad != M:
        x2d = jnp.pad(x2d, ((0, m_pad - M), (0, 0)))
    n_m = m_pad // tm

    est = (2 * tm * A * 2 + 2 * A * Dp * 2 + 2 * Dp * 4
           + 2 * Dp * D2 * 2 + 2 * D2 * 4 + 2 * tm * D2 * 4)
    out = pl.pallas_call(
        _caption_proj_kernel,
        out_shape=jax.ShapeDtypeStruct((m_pad, D2), jnp.float32),
        grid_spec=pltpu.PrefetchScalarGridSpec(
            num_scalar_prefetch=0,
            grid=(n_m,),
            in_specs=[
                pl.BlockSpec((tm, A), lambda i: (i, 0)),
                pl.BlockSpec((A, Dp), lambda i: (0, 0)),
                pl.BlockSpec((1, Dp), lambda i: (0, 0)),
                pl.BlockSpec((Dp, D2), lambda i: (0, 0)),
                pl.BlockSpec((1, D2), lambda i: (0, 0)),
            ],
            out_specs=pl.BlockSpec((tm, D2), lambda i: (i, 0)),
        ),
        compiler_params=pltpu.CompilerParams(
            dimension_semantics=("parallel",),
            vmem_limit_bytes=_clamp_vmem(4 * est)),
    )(x2d, prepared["w1_t"], prepared["b1"], prepared["w2_t"], prepared["b2"])
    return out[:M].reshape(B, T, D2)


def te_adapter_forward(x):
    # TEAdapter.forward(input) is the identity.
    return x


# ----------------------------------------------------------------------------
# Pure-JAX references
# ----------------------------------------------------------------------------
def _ref_attn(x_nchw, adp, params, heads, rescale):
    B, C, H, W = x_nchw.shape
    x = x_nchw.reshape(B, C, H * W).transpose(0, 2, 1)
    q = x @ params["wq"].T
    k = adp @ params["wk"].T
    v = adp @ params["wv"].T
    d = C // heads

    def split(t):
        return t.reshape(t.shape[0], t.shape[1], heads, d).transpose(0, 2, 1, 3)

    qh, kh, vh = split(q), split(k), split(v)
    s = jnp.einsum("bhqd,bhkd->bhqk", qh, kh) / jnp.sqrt(jnp.float32(d))
    p = jax.nn.softmax(s, axis=-1)
    o = jnp.einsum("bhqk,bhkd->bhqd", p, vh)
    o = o.transpose(0, 2, 1, 3).reshape(B, H * W, C)
    o = o @ params["wo"].T + params["bo"]
    o = (o + x) / rescale
    return o.transpose(0, 2, 1).reshape(B, C, H, W)


def _ref_caption_proj(adp, params):
    h = adp @ params["w1"].T + params["b1"]
    h = jax.nn.gelu(h, approximate=True)
    return h @ params["w2"].T + params["b2"]


# ----------------------------------------------------------------------------
if __name__ == "__main__":
    key = jax.random.PRNGKey(0)
    ks = jax.random.split(key, 12)

    # Small shapes implied by the module:
    B = 2                  # batch
    C = 32                 # hidden_size of the attention layer
    H = W = 8              # spatial (=> seq S = 64)
    heads = 4              # attn.heads
    A = 48                 # adapter_hidden_size (token_size, e.g. T5 d_model)
    T = 8                  # num_tokens of adapter text embeds
    Dp = 64                # caption_projection linear_1.out_features
    D2 = 64                # caption_projection linear_2.out_features

    hidden_states = jax.random.normal(ks[0], (B, C, H, W), jnp.float32)
    adapter_embeds = jax.random.normal(ks[1], (B, T, A), jnp.float32)

    attn_params = {
        "wq": 0.05 * jax.random.normal(ks[2], (C, C), jnp.float32),   # attn.to_q
        "wk": 0.05 * jax.random.normal(ks[3], (C, A), jnp.float32),   # to_k_adapter
        "wv": 0.05 * jax.random.normal(ks[4], (C, A), jnp.float32),   # to_v_adapter
        "wo": 0.05 * jax.random.normal(ks[5], (C, C), jnp.float32),   # attn.to_out[0]
        "bo": 0.05 * jax.random.normal(ks[6], (C,), jnp.float32),
    }
    proj_params = {
        "w1": 0.05 * jax.random.normal(ks[7], (Dp, A), jnp.float32),
        "b1": 0.05 * jax.random.normal(ks[8], (Dp,), jnp.float32),
        "w2": 0.05 * jax.random.normal(ks[9], (D2, Dp), jnp.float32),
        "b2": 0.05 * jax.random.normal(ks[10], (D2,), jnp.float32),
    }

    # One-time parameter prep (transposes / per-head splits / bf16 casts hoisted here).
    attn_prepared = prepare_attn_params(attn_params, heads=heads)
    proj_prepared = prepare_caption_proj_params(proj_params)

    # TEAdapter.forward: identity
    ident = te_adapter_forward(hidden_states)
    assert ident.shape == hidden_states.shape

    # TEAdapterAttnProcessor (Pallas), rescale_output_factor == 1.0 path.
    # tile_s=16 exercises the S-tile grid axis at this tiny S (S=64 -> 4 tiles).
    out_attn = te_adapter_attn_processor(
        hidden_states, adapter_embeds, attn_prepared,
        rescale_output_factor=1.0, tile_s=16)
    out_attn = jax.block_until_ready(out_attn)
    ref_attn = _ref_attn(hidden_states, adapter_embeds, attn_params, heads, 1.0)
    assert out_attn.shape == (B, C, H, W)
    assert jnp.allclose(out_attn, ref_attn, rtol=2e-2, atol=2e-2), (
        float(jnp.max(jnp.abs(out_attn - ref_attn))))

    # rescale_output_factor != 1.0 path (exercises the static rescale branch)
    out_attn2 = jax.block_until_ready(te_adapter_attn_processor(
        hidden_states, adapter_embeds, attn_prepared,
        rescale_output_factor=2.0, tile_s=16))
    ref_attn2 = _ref_attn(hidden_states, adapter_embeds, attn_params, heads, 2.0)
    assert jnp.allclose(out_attn2, ref_attn2, rtol=2e-2, atol=2e-2), (
        float(jnp.max(jnp.abs(out_attn2 - ref_attn2))))

    # TEAdapterCaptionProjection (Pallas), tile_m=8 -> 2 M-tiles at B*T=16.
    out_proj = te_adapter_caption_projection(adapter_embeds, proj_prepared, tile_m=8)
    out_proj = jax.block_until_ready(out_proj)
    ref_proj = _ref_caption_proj(adapter_embeds, proj_params)
    assert out_proj.shape == (B, T, D2)
    assert jnp.allclose(out_proj, ref_proj, rtol=2e-2, atol=2e-2), (
        float(jnp.max(jnp.abs(out_proj - ref_proj))))

    # TODO(synk): tokenizer / T5 text-encoder path in encode_text(), the weakref
    # adapter wiring and the is_active / conditional_embeds host-side branching have
    # no Pallas equivalent and are out of scope for a kernel.
    print("KERNEL_OK")
</pallas_src>

<mosaic_0001>
module attributes {stable_mosaic.version = 11 : i64} {
  func.func @_attn_kernel(%arg0: i32, %arg1: i32, %arg2: memref<1x16x32xbf16, #tpu.memory_space<vmem>>, %arg3: memref<1x128x48xbf16, #tpu.memory_space<vmem>>, %arg4: memref<4x32x8xbf16, #tpu.memory_space<vmem>>, %arg5: memref<4x48x16xbf16, #tpu.memory_space<vmem>>, %arg6: memref<4x8x32xbf16, #tpu.memory_space<vmem>>, %arg7: memref<1x32xf32, #tpu.memory_space<vmem>>, %arg8: memref<1x16x32xf32, #tpu.memory_space<vmem>>, %arg9: memref<16x32xf32, #tpu.memory_space<vmem>>) attributes {dimension_semantics = [#tpu.dimension_semantics<parallel>, #tpu.dimension_semantics<parallel>], iteration_bounds = array<i64: 2, 4>, scalar_prefetch = 0 : i64, scratch_operands = 1 : i64, tpu.core_type = #tpu.core_type<tc>, window_params = [{transform_indices = @transform_0, window_bounds = array<i64: 1, 16, 32>}, {transform_indices = @transform_1, window_bounds = array<i64: 1, 128, 48>}, {pipeline_mode = #tpu.pipeline_mode<synchronous>, transform_indices = @transform_2, window_bounds = array<i64: 4, 32, 8>}, {pipeline_mode = #tpu.pipeline_mode<synchronous>, transform_indices = @transform_3, window_bounds = array<i64: 4, 48, 16>}, {pipeline_mode = #tpu.pipeline_mode<synchronous>, transform_indices = @transform_4, window_bounds = array<i64: 4, 8, 32>}, {pipeline_mode = #tpu.pipeline_mode<synchronous>, transform_indices = @transform_5, window_bounds = array<i64: 1, 32>}, {transform_indices = @transform_6, window_bounds = array<i64: 1, 16, 32>}]} {
    %c0 = arith.constant 0 : index
    %c0_0 = arith.constant 0 : index
    %c0_1 = arith.constant 0 : index
    %0 = vector.load %arg2[%c0, %c0_0, %c0_1] : memref<1x16x32xbf16, #tpu.memory_space<vmem>>, vector<1x16x32xbf16>
    %1 = vector.shape_cast %0 : vector<1x16x32xbf16> to vector<16x32xbf16>
    %c0_2 = arith.constant 0 : index
    %c0_3 = arith.constant 0 : index
    %c0_4 = arith.constant 0 : index
    %2 = vector.load %arg3[%c0_2, %c0_3, %c0_4] : memref<1x128x48xbf16, #tpu.memory_space<vmem>>, vector<1x128x48xbf16>
    %3 = vector.shape_cast %2 : vector<1x128x48xbf16> to vector<128x48xbf16>
    %cst = arith.constant 0.000000e+00 : f32
    %4 = vector.broadcast %cst : f32 to vector<16x32xf32>
    %c0_5 = arith.constant 0 : index
    %c0_6 = arith.constant 0 : index
    %5 = vector.load %arg9[%c0_5, %c0_6] : memref<16x32xf32, #tpu.memory_space<vmem>>, vector<16x32xf32>
    tpu.vector_store %arg9[%c0_5, %c0_6], %4 {strides = array<i32>} : memref<16x32xf32, #tpu.memory_space<vmem>>, vector<16x32xf32>,
    %6 = tpu.iota {dimensions = array<i32: 1>} : vector<16x128xi32>
    %c8_i32 = arith.constant 8 : i32
    %7 = vector.broadcast %c8_i32 : i32 to vector<16x128xi32>
    %8 = arith.cmpi sge, %6, %7 : vector<16x128xi32>
    %c0_i32 = arith.constant 0 : i32
    %c4_i32 = arith.constant 4 : i32
    %9 = arith.addi %c0_i32, %c4_i32 : i32
    %c1_i32 = arith.constant 1 : i32
    scf.for %arg10 = %c0_i32 to %9 step %c1_i32  : i32 {
      %19 = arith.index_cast %arg10 : i32 to index
      %c0_15 = arith.constant 0 : index
      %c0_16 = arith.constant 0 : index
      %20 = vector.load %arg4[%19, %c0_15, %c0_16] : memref<4x32x8xbf16, #tpu.memory_space<vmem>>, vector<1x32x8xbf16>
      %21 = vector.shape_cast %20 : vector<1x32x8xbf16> to vector<32x8xbf16>
      %22 = arith.index_cast %arg10 : i32 to index
      %c0_17 = arith.constant 0 : index
      %c0_18 = arith.constant 0 : index
      %23 = vector.load %arg5[%22, %c0_17, %c0_18] : memref<4x48x16xbf16, #tpu.memory_space<vmem>>, vector<1x48x16xbf16>
      %24 = vector.shape_cast %23 : vector<1x48x16xbf16> to vector<48x16xbf16>
      %25 = arith.index_cast %arg10 : i32 to index
      %c0_19 = arith.constant 0 : index
      %c0_20 = arith.constant 0 : index
      %26 = vector.load %arg6[%25, %c0_19, %c0_20] : memref<4x8x32xbf16, #tpu.memory_space<vmem>>, vector<1x8x32xbf16>
      %27 = vector.shape_cast %26 : vector<1x8x32xbf16> to vector<8x32xbf16>
      %cst_21 = arith.constant dense<0.000000e+00> : vector<16x8xf32>
      %28 = tpu.matmul %1, %21, %cst_21 {dimension_numbers = #tpu.dot_dimension_numbers<[1], [0], [0], [1], [0, 0, 1, 1], [], []>} : vector<16x32xbf16>, vector<32x8xbf16>, vector<16x8xf32> -> vector<16x8xf32>
      %cst_22 = arith.constant dense<0.000000e+00> : vector<128x16xf32>
      %29 = tpu.matmul %3, %24, %cst_22 {dimension_numbers = #tpu.dot_dimension_numbers<[1], [0], [0], [1], [0, 0, 1, 1], [], []>} : vector<128x48xbf16>, vector<48x16xbf16>, vector<128x16xf32> -> vector<128x16xf32>
      %30 = vector.extract_strided_slice %29 {offsets = [0, 0], sizes = [128, 8], strides = [1, 1]} : vector<128x16xf32> to vector<128x8xf32>
      %31 = vector.extract_strided_slice %29 {offsets = [0, 8], sizes = [128, 8], strides = [1, 1]} : vector<128x16xf32> to vector<128x8xf32>
      %32 = arith.truncf %28 : vector<16x8xf32> to vector<16x8xbf16>
      %33 = arith.truncf %30 : vector<128x8xf32> to vector<128x8xbf16>
      %cst_23 = arith.constant dense<0.000000e+00> : vector<16x128xf32>
      %34 = tpu.matmul %32, %33, %cst_23 {dimension_numbers = #tpu.dot_dimension_numbers<[1], [1], [0], [0], [0, 0, 1, 0], [], []>} : vector<16x8xbf16>, vector<128x8xbf16>, vector<16x128xf32> -> vector<16x128xf32>
      %cst_24 = arith.constant -1.000000e+30 : f32
      %35 = vector.broadcast %cst_24 : f32 to vector<16x128xf32>
      %36 = arith.select %8, %35, %34 : vector<16x128xi1>, vector<16x128xf32>
      %cst_25 = arith.constant dense<0xFF800000> : vector<16xf32>
      %37 = vector.multi_reduction <maximumf>, %36, %cst_25 [1] : vector<16x128xf32> to vector<16xf32>
      %38 = vector.shape_cast %37 : vector<16xf32> to vector<16x1xf32>
      %39 = vector.broadcast %38 : vector<16x1xf32> to vector<16x128xf32>
      %40 = arith.subf %36, %39 : vector<16x128xf32>
      %41 = math.exp %40 : vector<16x128xf32>
      %cst_26 = arith.constant dense<0.000000e+00> : vector<16xf32>
      %42 = vector.multi_reduction <add>, %41, %cst_26 [1] : vector<16x128xf32> to vector<16xf32>
      %43 = vector.shape_cast %42 : vector<16xf32> to vector<16x1xf32>
      %44 = tpu.reciprocal %43 : vector<16x1xf32> -> vector<16x1xf32>
      %45 = vector.broadcast %44 : vector<16x1xf32> to vector<16x128xf32>
      %46 = arith.mulf %41, %45 : vector<16x128xf32>
      %47 = arith.truncf %46 : vector<16x128xf32> to vector<16x128xbf16>
      %48 = arith.truncf %31 : vector<128x8xf32> to vector<128x8xbf16>
      %cst_27 = arith.constant dense<0.000000e+00> : vector<16x8xf32>
      %49 = tpu.matmul %47, %48, %cst_27 {dimension_numbers = #tpu.dot_dimension_numbers<[1], [0], [0], [1], [0, 0, 1, 1], [], []>} : vector<16x128xbf16>, vector<128x8xbf16>, vector<16x8xf32> -> vector<16x8xf32>
      %c0_28 = arith.constant 0 : index
      %c0_29 = arith.constant 0 : index
      %50 = vector.load %arg9[%c0_28, %c0_29] : memref<16x32xf32, #tpu.memory_space<vmem>>, vector<16x32xf32>
      %51 = arith.truncf %49 : vector<16x8xf32> to vector<16x8xbf16>
      %cst_30 = arith.constant dense<0.000000e+00> : vector<16x32xf32>
      %52 = tpu.matmul %51, %27, %cst_30 {dimension_numbers = #tpu.dot_dimension_numbers<[1], [0], [0], [1], [0, 0, 1, 1], [], []>} : vector<16x8xbf16>, vector<8x32xbf16>, vector<16x32xf32> -> vector<16x32xf32>
      %53 = arith.addf %50, %52 : vector<16x32xf32>
      %c0_31 = arith.constant 0 : index
      %c0_32 = arith.constant 0 : index
      %54 = vector.load %arg9[%c0_31, %c0_32] : memref<16x32xf32, #tpu.memory_space<vmem>>, vector<16x32xf32>
      tpu.vector_store %arg9[%c0_31, %c0_32], %53 {strides = array<i32>} : memref<16x32xf32, #tpu.memory_space<vmem>>, vector<16x32xf32>,
    }
    %c4_i32_7 = arith.constant 4 : i32
    %c0_8 = arith.constant 0 : index
    %c0_9 = arith.constant 0 : index
    %10 = vector.load %arg9[%c0_8, %c0_9] : memref<16x32xf32, #tpu.memory_space<vmem>>, vector<16x32xf32>
    %c0_10 = arith.constant 0 : index
    %c0_11 = arith.constant 0 : index
    %11 = vector.load %arg7[%c0_10, %c0_11] : memref<1x32xf32, #tpu.memory_space<vmem>>, vector<1x32xf32>
    %12 = vector.broadcast %11 : vector<1x32xf32> to vector<16x32xf32>
    %13 = arith.addf %10, %12 : vector<16x32xf32>
    %14 = arith.extf %1 : vector<16x32xbf16> to vector<16x32xf32>
    %15 = arith.addf %13, %14 : vector<16x32xf32>
    %c0_12 = arith.constant 0 : index
    %c0_13 = arith.constant 0 : index
    %c0_14 = arith.constant 0 : index
    %16 = vector.load %arg8[%c0_12, %c0_13, %c0_14] : memref<1x16x32xf32, #tpu.memory_space<vmem>>, vector<1x16x32xf32>
    %17 = vector.shape_cast %16 : vector<1x16x32xf32> to vector<16x32xf32>
    %18 = vector.shape_cast %15 : vector<16x32xf32> to vector<1x16x32xf32>
    tpu.vector_store %arg8[%c0_12, %c0_13, %c0_14], %18 {strides = array<i32>} : memref<1x16x32xf32, #tpu.memory_space<vmem>>, vector<1x16x32xf32>,
    return
  }
  func.func @transform_0(%arg0: i32, %arg1: i32) -> (i32, i32, i32) {
    %c0_i32 = arith.constant 0 : i32
    %c0_i32_0 = arith.constant 0 : i32
    return %arg0, %arg1, %c0_i32 : i32, i32, i32
  }
  func.func @transform_1(%arg0: i32, %arg1: i32) -> (i32, i32, i32) {
    %c0_i32 = arith.constant 0 : i32
    %c0_i32_0 = arith.constant 0 : i32
    %c0_i32_1 = arith.constant 0 : i32
    return %arg0, %c0_i32, %c0_i32_0 : i32, i32, i32
  }
  func.func @transform_2(%arg0: i32, %arg1: i32) -> (i32, i32, i32) {
    %c0_i32 = arith.constant 0 : i32
    %c0_i32_0 = arith.constant 0 : i32
    %c0_i32_1 = arith.constant 0 : i32
    %c0_i32_2 = arith.constant 0 : i32
    return %c0_i32, %c0_i32_0, %c0_i32_1 : i32, i32, i32
  }
  func.func @transform_3(%arg0: i32, %arg1: i32) -> (i32, i32, i32) {
    %c0_i32 = arith.constant 0 : i32
    %c0_i32_0 = arith.constant 0 : i32
    %c0_i32_1 = arith.constant 0 : i32
    %c0_i32_2 = arith.constant 0 : i32
    return %c0_i32, %c0_i32_0, %c0_i32_1 : i32, i32, i32
  }
  func.func @transform_4(%arg0: i32, %arg1: i32) -> (i32, i32, i32) {
    %c0_i32 = arith.constant 0 : i32
    %c0_i32_0 = arith.constant 0 : i32
    %c0_i32_1 = arith.constant 0 : i32
    %c0_i32_2 = arith.constant 0 : i32
    return %c0_i32, %c0_i32_0, %c0_i32_1 : i32, i32, i32
  }
  func.func @transform_5(%arg0: i32, %arg1: i32) -> (i32, i32) {
    %c0_i32 = arith.constant 0 : i32
    %c0_i32_0 = arith.constant 0 : i32
    %c0_i32_1 = arith.constant 0 : i32
    return %c0_i32, %c0_i32_0 : i32, i32
  }
  func.func @transform_6(%arg0: i32, %arg1: i32) -> (i32, i32, i32) {
    %c0_i32 = arith.constant 0 : i32
    %c0_i32_0 = arith.constant 0 : i32
    return %arg0, %arg1, %c0_i32 : i32, i32, i32
  }
}

</mosaic_0001>

<llo_original>
// kernel: tpu_custom_call.1
$region0: #{tpu_custom_call.1}
  #allocation0 [shape = 'u32[]', space=smem, size = 0x4, offset = 0x4, fixed_abs, tag = 'smem constant byte address 0x4 - core index']
  #allocation1 [shape = 'u32[72,128]{1,0:T(1,128)}', space=vmem, size = 0x9000, scoped, tag = 'internal scratch']
  #allocation2 [shape = 'f32[16,32]{1,0:T(8,128)}', space=vmem, size = 0x2000, scoped, tag = 'scratch operand']
  %s0 = inlined_call_operand.vmem [shape: bf16[2,64,32], index: 0, kind: input, shape index: {}]
  %s1 = inlined_call_operand.vmem [shape: bf16[2,128,48], index: 1, kind: input, shape index: {}]
  %s2 = inlined_call_operand.vmem [shape: bf16[4,32,8], index: 2, kind: input, shape index: {}]
  %s3 = inlined_call_operand.vmem [shape: bf16[4,48,16], index: 3, kind: input, shape index: {}]
  %s4 = inlined_call_operand.vmem [shape: bf16[4,8,32], index: 4, kind: input, shape index: {}]
  %s5 = inlined_call_operand.vmem [shape: f32[1,32], index: 5, kind: input, shape index: {}]
  %s6 = inlined_call_operand.vmem [shape: f32[2,64,32], index: 6, kind: output, shape index: {}]
  %s7 = sld [smem:[#allocation0]]
  $region64: #{tpu_custom_call.1} parent=0
    _
  %s9 = ssub.s32 1, %s7
  %s10 = scalar_select 0, %s9, %s7
  loop: start=0, step=1, limit=10
  $region2: #{tpu_custom_call.1} parent=0 // loop_pre_header
    _
  $region3: #{tpu_custom_call.1} parent=0 // loop_header
    %s12 = sphi 0, %s16
    %p13 = scmp.ge.s32.totalorder %s12, 10
    %s19 = sphi 0, %s31
    %s20 = sphi 0, %s27
    %s21 = sphi 0, %s19
    %s22 = sphi 0, %s20
    %s23 = sphi 0, %s21
    %s24 = sphi 0, %s22
    %s36 = sphi 0, %s38
    %s39 = sphi 0, %s36
    %s40 = sphi 0, %s39
    %s56 = sphi 0, %s40
    %s62 = sphi 0, %s64
    %s65 = sphi 0, %s62
    %s66 = sphi 0, %s65
    %s82 = sphi 0, %s66
    %s86 = sphi 0, %s86
    %s88 = sphi 0, %s86
    %s89 = sphi 0, %s88
    %s103 = sphi 0, %s89
    %s107 = sphi 0, %s107
    %s109 = sphi 0, %s107
    %s110 = sphi 0, %s109
    %s124 = sphi 0, %s110
    %s128 = sphi 0, %s128
    %s130 = sphi 0, %s128
    %s131 = sphi 0, %s130
    %s145 = sphi 0, %s131
    %s149 = sphi 0, %s149
    %s151 = sphi 0, %s149
    %s152 = sphi 0, %s151
    %s166 = sphi 0, %s152
    %s174 = sphi 0, %s176
    %s177 = sphi 0, %s174
    %s178 = sphi 0, %s177
    %s194 = sphi 0, %s178
  $region4: #{tpu_custom_call.1} parent=0 // loop_header_branch
    %15 = sbr.rel (%p13) target = $region8
  $region5: #{tpu_custom_call.1} parent=0 // loop_body
    %s17 = ssub.s32 %s12, 1
    %s18 = ssub.s32 %s12, 2
    %s25 = sadd.s32 1, %s20
    %p26 = scmp.ge.s32.totalorder %s25, 4
    %s27 = scalar_select %p26, 0, %s25
    %s28 = sadd.s32 1, %s19
    %s29 = scalar_select %p26, %s28, %s19
    %p30 = scmp.ge.s32.totalorder %s29, 2
    %s31 = scalar_select %p30, 0, %s29
    %s32 = ssub.s32 %s19, %s31
    %s33 = ssub.s32 %s20, %s27
    %s34 = sor.u32 %s32, %s33
    %p35 = scmp.eq.s32.totalorder %s34, 0
    %s37 = sadd.s32 %s36, 1
    %s38 = scalar_select %p35, %s36, %s37
    %p41 = pneg %p35
    %p42 = scmp.eq.s32.totalorder %s12, 7
    %p43 = por %p41, %p42
    %p44 = scmp.ne.s32.totalorder %s36, %s39
    %p45 = scmp.eq.s32.totalorder %s12, 0
    %p46 = por %p44, %p45
    %p47 = scmp.ne.s32.totalorder %s36, %s39
    %p48 = scmp.eq.s32.totalorder %s17, 7
    %p49 = por %p47, %p48
    %p50 = scmp.ne.s32.totalorder %s39, %s40
    %p51 = scmp.eq.s32.totalorder %s17, 0
    %p52 = por %p50, %p51
    %p53 = scmp.ne.s32.totalorder %s39, %s40
    %p54 = scmp.eq.s32.totalorder %s18, 7
    %p55 = por %p53, %p54
    %p57 = scmp.ne.s32.totalorder %s40, %s56
    %p58 = scmp.eq.s32.totalorder %s18, 0
    %p59 = por %p57, %p58
    %s60 = ssub.s32 %s19, %s31
    %p61 = scmp.eq.s32.totalorder %s60, 0
    %s63 = sadd.s32 %s62, 1
    %s64 = scalar_select %p61, %s62, %s63
    %p67 = pneg %p61
    %p68 = scmp.eq.s32.totalorder %s12, 7
    %p69 = por %p67, %p68
    %p70 = scmp.ne.s32.totalorder %s62, %s65
    %p71 = scmp.eq.s32.totalorder %s12, 0
    %p72 = por %p70, %p71
    %p73 = scmp.ne.s32.totalorder %s62, %s65
    %p74 = scmp.eq.s32.totalorder %s17, 7
    %p75 = por %p73, %p74
    %p76 = scmp.ne.s32.totalorder %s65, %s66
    %p77 = scmp.eq.s32.totalorder %s17, 0
    %p78 = por %p76, %p77
    %p79 = scmp.ne.s32.totalorder %s65, %s66
    %p80 = scmp.eq.s32.totalorder %s18, 7
    %p81 = por %p79, %p80
    %p83 = scmp.ne.s32.totalorder %s66, %s82
    %p84 = scmp.eq.s32.totalorder %s18, 0
    %p85 = por %p83, %p84
    %s87 = sadd.s32 %s86, 1
    %p90 = scmp.eq.s32.totalorder %s12, 7
    %p91 = scmp.ne.s32.totalorder %s86, %s88
    %p92 = scmp.eq.s32.totalorder %s12, 0
    %p93 = por %p91, %p92
    %p94 = scmp.ne.s32.totalorder %s86, %s88
    %p95 = scmp.eq.s32.totalorder %s17, 7
    %p96 = por %p94, %p95
    %p97 = scmp.ne.s32.totalorder %s88, %s89
    %p98 = scmp.eq.s32.totalorder %s17, 0
    %p99 = por %p97, %p98
    %p100 = scmp.ne.s32.totalorder %s88, %s89
    %p101 = scmp.eq.s32.totalorder %s18, 7
    %p102 = por %p100, %p101
    %p104 = scmp.ne.s32.totalorder %s89, %s103
    %p105 = scmp.eq.s32.totalorder %s18, 0
    %p106 = por %p104, %p105
    %s108 = sadd.s32 %s107, 1
    %p111 = scmp.eq.s32.totalorder %s12, 7
    %p112 = scmp.ne.s32.totalorder %s107, %s109
    %p113 = scmp.eq.s32.totalorder %s12, 0
    %p114 = por %p112, %p113
    %p115 = scmp.ne.s32.totalorder %s107, %s109
    %p116 = scmp.eq.s32.totalorder %s17, 7
    %p117 = por %p115, %p116
    %p118 = scmp.ne.s32.totalorder %s109, %s110
    %p119 = scmp.eq.s32.totalorder %s17, 0
    %p120 = por %p118, %p119
    %p121 = scmp.ne.s32.totalorder %s109, %s110
    %p122 = scmp.eq.s32.totalorder %s18, 7
    %p123 = por %p121, %p122
    %p125 = scmp.ne.s32.totalorder %s110, %s124
    %p126 = scmp.eq.s32.totalorder %s18, 0
    %p127 = por %p125, %p126
    %s129 = sadd.s32 %s128, 1
    %p132 = scmp.eq.s32.totalorder %s12, 7
    %p133 = scmp.ne.s32.totalorder %s128, %s130
    %p134 = scmp.eq.s32.totalorder %s12, 0
    %p135 = por %p133, %p134
    %p136 = scmp.ne.s32.totalorder %s128, %s130
    %p137 = scmp.eq.s32.totalorder %s17, 7
    %p138 = por %p136, %p137
    %p139 = scmp.ne.s32.totalorder %s130, %s131
    %p140 = scmp.eq.s32.totalorder %s17, 0
    %p141 = por %p139, %p140
    %p142 = scmp.ne.s32.totalorder %s130, %s131
    %p143 = scmp.eq.s32.totalorder %s18, 7
    %p144 = por %p142, %p143
    %p146 = scmp.ne.s32.totalorder %s131, %s145
    %p147 = scmp.eq.s32.totalorder %s18, 0
    %p148 = por %p146, %p147
    %s150 = sadd.s32 %s149, 1
    %p153 = scmp.eq.s32.totalorder %s12, 7
    %p154 = scmp.ne.s32.totalorder %s149, %s151
    %p155 = scmp.eq.s32.totalorder %s12, 0
    %p156 = por %p154, %p155
    %p157 = scmp.ne.s32.totalorder %s149, %s151
    %p158 = scmp.eq.s32.totalorder %s17, 7
    %p159 = por %p157, %p158
    %p160 = scmp.ne.s32.totalorder %s151, %s152
    %p161 = scmp.eq.s32.totalorder %s17, 0
    %p162 = por %p160, %p161
    %p163 = scmp.ne.s32.totalorder %s151, %s152
    %p164 = scmp.eq.s32.totalorder %s18, 7
    %p165 = por %p163, %p164
    %p167 = scmp.ne.s32.totalorder %s152, %s166
    %p168 = scmp.eq.s32.totalorder %s18, 0
    %p169 = por %p167, %p168
    %s170 = ssub.s32 %s19, %s31
    %s171 = ssub.s32 %s20, %s27
    %s172 = sor.u32 %s170, %s171
    %p173 = scmp.eq.s32.totalorder %s172, 0
    %s175 = sadd.s32 %s174, 1
    %s176 = scalar_select %p173, %s174, %s175
    %p179 = pneg %p173
    %p180 = scmp.eq.s32.totalorder %s12, 7
    %p181 = por %p179, %p180
    %p182 = scmp.ne.s32.totalorder %s174, %s177
    %p183 = scmp.eq.s32.totalorder %s12, 0
    %p184 = por %p182, %p183
    %p185 = scmp.ne.s32.totalorder %s174, %s177
    %p186 = scmp.eq.s32.totalorder %s17, 7
    %p187 = por %p185, %p186
    %p188 = scmp.ne.s32.totalorder %s177, %s178
    %p189 = scmp.eq.s32.totalorder %s17, 0
    %p190 = por %p188, %p189
    %p191 = scmp.ne.s32.totalorder %s177, %s178
    %p192 = scmp.eq.s32.totalorder %s18, 7
    %p193 = por %p191, %p192
    %p195 = scmp.ne.s32.totalorder %s178, %s194
    %p196 = scmp.eq.s32.totalorder %s18, 0
    %p197 = por %p195, %p196
    %p198 = scmp.le.s32.totalorder 1, %s12
    %p199 = scmp.lt.s32.totalorder %s12, 9
    %p200 = pnand %p198, %p199
    %p201 = pneg %p200
    // Predicated region
    $region9: #{tpu_custom_call.1} parent=5 // pred_check
      _
    $region10: #{tpu_custom_call.1} parent=5 // pred_check_branch
      %203 = sbr.rel (%p200) target = $region12
    $region11: #{tpu_custom_call.1} parent=5 // pred_region
      %s204 = ssub.s32 %s12, 1
      // Predicated region
      $region13: #{tpu_custom_call.1} parent=11 // pred_check
        %p205 = pneg %p99
      $region14: #{tpu_custom_call.1} parent=11 // pred_check_branch
        %207 = sbr.rel (%p205) target = $region16
      $region15: #{tpu_custom_call.1} parent=11 // pred_region
        _
      $region16: #{tpu_custom_call.1} parent=11 // pred_fallthru
        _
      // Predicated region
      $region17: #{tpu_custom_call.1} parent=11 // pred_check
        %p208 = pneg %p120
      $region18: #{tpu_custom_call.1} parent=11 // pred_check_branch
        %210 = sbr.rel (%p208) target = $region20
      $region19: #{tpu_custom_call.1} parent=11 // pred_region
        _
      $region20: #{tpu_custom_call.1} parent=11 // pred_fallthru
        _
      // Predicated region
      $region21: #{tpu_custom_call.1} parent=11 // pred_check
        %p211 = pneg %p141
      $region22: #{tpu_custom_call.1} parent=11 // pred_check_branch
        %213 = sbr.rel (%p211) target = $region24
      $region23: #{tpu_custom_call.1} parent=11 // pred_region
        _
      $region24: #{tpu_custom_call.1} parent=11 // pred_fallthru
        _
      // Predicated region
      $region25: #{tpu_custom_call.1} parent=11 // pred_check
        %p214 = pneg %p162
      $region26: #{tpu_custom_call.1} parent=11 // pred_check_branch
        %216 = sbr.rel (%p214) target = $region28
      $region27: #{tpu_custom_call.1} parent=11 // pred_region
        _
      $region28: #{tpu_custom_call.1} parent=11 // pred_fallthru
        _
    $region12: #{tpu_custom_call.1} parent=5 // pred_fallthru
      _
    %p217 = scmp.lt.s32.totalorder %s12, 8
    // Predicated region
    $region29: #{tpu_custom_call.1} parent=5 // pred_check
      %p218 = pneg %p217
    $region30: #{tpu_custom_call.1} parent=5 // pred_check_branch
      %220 = sbr.rel (%p218) target = $region32
    $region31: #{tpu_custom_call.1} parent=5 // pred_region
      // Predicated region
      $region33: #{tpu_custom_call.1} parent=31 // pred_check
        %p221 = pneg %p46
      $region34: #{tpu_custom_call.1} parent=31 // pred_check_branch
        %223 = sbr.rel (%p221) target = $region36
      $region35: #{tpu_custom_call.1} parent=31 // pred_region
        %s224 = smul.u32 2, %s20
        %p225 = scmp.lt.s32.totalorder %s19, 1
        %s226 = scalar_select %p225, %s19, 1
        %p227 = scmp.lt.s32.totalorder %s224, 7
        %s228 = scalar_select %p227, %s224, 7
        %s229 = smul.addr %s226, 8
        %s230 = sadd.s32 %s228, %s229
        %s231 = smul.addr %s230, 4
        %s232 = scalar_lea.vmem %s0, %s231
        %s233 = smul.u32 2, %s20
      $region36: #{tpu_custom_call.1} parent=31 // pred_fallthru
        _
      // Predicated region
      $region37: #{tpu_custom_call.1} parent=31 // pred_check
        %p234 = pneg %p72
      $region38: #{tpu_custom_call.1} parent=31 // pred_check_branch
        %236 = sbr.rel (%p234) target = $region40
      $region39: #{tpu_custom_call.1} parent=31 // pred_region
        %p237 = scmp.lt.s32.totalorder %s19, 1
        %s238 = scalar_select %p237, %s19, 1
        %s239 = smul.addr %s238, 16
        %s240 = smul.addr %s239, 4
        %s241 = scalar_lea.vmem %s1, %s240
      $region40: #{tpu_custom_call.1} parent=31 // pred_fallthru
        _
    $region32: #{tpu_custom_call.1} parent=5 // pred_fallthru
      _
    %p242 = scmp.le.s32.totalorder 1, %s12
    %p243 = scmp.lt.s32.totalorder %s12, 9
    %p244 = pnand %p242, %p243
    %p245 = pneg %p244
    // Predicated region
    $region41: #{tpu_custom_call.1} parent=5 // pred_check
      _
    $region42: #{tpu_custom_call.1} parent=5 // pred_check_branch
      %247 = sbr.rel (%p244) target = $region44
    $region43: #{tpu_custom_call.1} parent=5 // pred_region
      %s248 = ssub.s32 %s12, 1
      %s249 = smul.u32 2, %s22
      %p250 = scmp.lt.s32.totalorder %s21, 1
      %s251 = scalar_select %p250, %s21, 1
      %p252 = scmp.lt.s32.totalorder %s249, 7
      %s253 = scalar_select %p252, %s249, 7
      %s254 = smul.addr %s251, 8
      %s255 = sadd.s32 %s253, %s254
      %s256 = smul.addr %s255, 4
      %s257 = scalar_lea.vmem %s0, %s256
      %p258 = pneg %p52
      %p259 = pneg %p49
      %p260 = scmp.lt.s32.totalorder %s21, 1
      %s261 = scalar_select %p260, %s21, 1
      %s262 = smul.addr %s261, 16
      %s263 = smul.addr %s262, 4
      %s264 = scalar_lea.vmem %s1, %s263
      %p265 = pneg %p78
      %p266 = pneg %p75
      %p267 = pneg %p99
      %p268 = pneg %p96
      %p269 = pneg %p120
      %p270 = pneg %p117
      %p271 = pneg %p141
      %p272 = pneg %p138
      %p273 = pneg %p162
      %p274 = pneg %p159
      %p275 = pneg %p190
      %p276 = pneg %p187
      %s277 = smul.u32 2, %s22
      %p278 = scmp.lt.s32.totalorder %s21, 1
      %s279 = scalar_select %p278, %s21, 1
      %p280 = scmp.lt.s32.totalorder %s277, 7
      %s281 = scalar_select %p280, %s277, 7
      %s282 = smul.addr %s279, 8
      %s283 = sadd.s32 %s281, %s282
      %s284 = smul.addr %s283, 8
      %s285 = scalar_lea.vmem %s6, %s284
      %s286 = smul.u32 2, %s22
      %p287 = scmp.lt.s32.totalorder %s21, 1
      %s288 = scalar_select %p287, %s21, 1
      %p289 = scmp.lt.s32.totalorder %s286, 7
      %s290 = scalar_select %p289, %s286, 7
      %s291 = smul.addr %s288, 8
      %s292 = sadd.s32 %s290, %s291
      %s293 = smul.addr %s292, 4
      %s294 = scalar_lea.vmem %s0, %s293
      %s295 = smul.u32 2, %s22
      %p296 = scmp.lt.s32.totalorder %s21, 1
      %s297 = scalar_select %p296, %s21, 1
      %s298 = smul.addr %s297, 16
      %s299 = smul.addr %s298, 4
      %s300 = scalar_lea.vmem %s1, %s299
      %s301 = smul.u32 2, %s22
      %p302 = scmp.lt.s32.totalorder %s21, 1
      %s303 = scalar_select %p302, %s21, 1
      %p304 = scmp.lt.s32.totalorder %s301, 7
      %s305 = scalar_select %p304, %s301, 7
      %s306 = smul.addr %s303, 8
      %s307 = sadd.s32 %s305, %s306
      %s308 = smul.addr %s307, 8
      %s309 = scalar_lea.vmem %s6, %s308
      %s310 = smul.u32 2, %s22
      %v312 = vld [vmem:[%s294] sm:$0xf]
      %v313 = vld [vmem:[%s294 + $0x4] sm:$0xf]
      %v314 = vld [vmem:[%s300] sm:$0xf]
      %v315 = vld [vmem:[%s300 + $0x4] sm:$0xf]
      %v316 = vld [vmem:[%s300 + $0x8] sm:$0xf]
      %v317 = vld [vmem:[%s300 + $0xc] sm:$0xf]
      %v318 = vld [vmem:[%s300 + $0x10] sm:$0xf]
      %v319 = vld [vmem:[%s300 + $0x14] sm:$0xf]
      %v320 = vld [vmem:[%s300 + $0x18] sm:$0xf]
      %v321 = vld [vmem:[%s300 + $0x1c] sm:$0xf]
      %v322 = vld [vmem:[%s300 + $0x20] sm:$0xf]
      %v323 = vld [vmem:[%s300 + $0x24] sm:$0xf]
      %v324 = vld [vmem:[%s300 + $0x28] sm:$0xf]
      %v325 = vld [vmem:[%s300 + $0x2c] sm:$0xf]
      %v326 = vld [vmem:[%s300 + $0x30] sm:$0xf]
      %v327 = vld [vmem:[%s300 + $0x34] sm:$0xf]
      %v328 = vld [vmem:[%s300 + $0x38] sm:$0xf]
      %v329 = vld [vmem:[%s300 + $0x3c] sm:$0xf]
      %vm330 = vcmask 261120
      %331 = vst.msk [vmem:[#allocation2] sm:$0xff] %vm330, 0.0
      %332 = vst.msk [vmem:[#allocation2 + $0x8] sm:$0xff] %vm330, 0.0
      %v333 = vlaneseq
      %v334 = vand.u32 %v333, 127
      %vm335 = vcmp.ge.s32.totalorder %v334, 8
      loop: start=0, step=1, limit=4
      $region45: #{tpu_custom_call.1} parent=43 // loop_pre_header
        _
      $region46: #{tpu_custom_call.1} parent=43 // loop_header
        %s337 = sphi 0, %s341
        %p338 = scmp.ge.s32.totalorder %s337, 4
      $region47: #{tpu_custom_call.1} parent=43 // loop_header_branch
        %340 = sbr.rel (%p338) target = $region51
      $region48: #{tpu_custom_call.1} parent=43 // loop_body
        %s342 = smul.u32 %s337, 4
        %s343 = smul.addr %s342, 4
        %s344 = scalar_lea.vmem %s2, %s343
        %v345 = vld [vmem:[%s344] sm:$0xf]
        %v346 = vld [vmem:[%s344 + $0x4] sm:$0xf]
        %v347 = vld [vmem:[%s344 + $0x8] sm:$0xf]
        %v348 = vld [vmem:[%s344 + $0xc] sm:$0xf]
        %s349 = smul.u32 %s337, 6
        %s350 = smul.addr %s349, 4
        %s351 = scalar_lea.vmem %s3, %s350
        %v352 = vld [vmem:[%s351] sm:$0xf]
        %v353 = vld [vmem:[%s351 + $0x4] sm:$0xf]
        %v354 = vld [vmem:[%s351 + $0x8] sm:$0xf]
        %v355 = vld [vmem:[%s351 + $0xc] sm:$0xf]
        %v356 = vld [vmem:[%s351 + $0x10] sm:$0xf]
        %v357 = vld [vmem:[%s351 + $0x14] sm:$0xf]
        %s358 = smul.addr %s337, 4
        %s359 = scalar_lea.vmem %s4, %s358
        %v360 = vld [vmem:[%s359] sm:$0xf]
        %v363 = vunpack.c.l.b16 %v312
        %v364 = vunpack.c.l.b16 %v313
        %v365 = vpack.c.b16 %v364, %v363
        %v370 = vunpack.c.l.b16 %v345
        %v371 = vunpack.c.l.b16 %v346
        %v372 = vunpack.c.l.b16 %v347
        %v373 = vunpack.c.l.b16 %v348
        %v374 = vpack.c.b16 %v371, %v370
        %v375 = vpack.c.b16 %v373, %v372
        %v379 = vsel %vm330, %v365, 0
        %381 = vmatpush.bf16.msra.mxu0 0
        %382 = vmatpush.bf16.msra.mxu0 0
        %383 = vmatpush.bf16.msra.mxu0 0
        %384 = vmatpush.bf16.msra.mxu0 0
        %385 = vmatpush.bf16.msra.mxu0 0
        %386 = vmatpush.bf16.msra.mxu0 0
        %387 = vmatpush.bf16.msra.mxu0 %v375
        %388 = vmatpush.bf16.msra.mxu0 %v374
        %389 = vmatmul.bf16.gmra.mxu0 %v379
        %v390 = vpop.f32.mrf.mxu0
        %v391 = vadd.f32 0.0, %v390
        %v392 = vpop.f32.mrf.mxu0
        %v393 = vadd.f32 0.0, %v392
        %394 = vdwg.mxu0
        %v411 = vunpack.c.l.b16 %v314
        %v412 = vunpack.c.l.b16 %v315
        %v413 = vunpack.c.l.b16 %v316
        %v414 = vunpack.c.l.b16 %v317
        %v415 = vunpack.c.l.b16 %v318
        %v416 = vunpack.c.l.b16 %v319
        %v417 = vunpack.c.l.b16 %v320
        %v418 = vunpack.c.l.b16 %v321
        %v419 = vunpack.c.l.b16 %v322
        %v420 = vunpack.c.l.b16 %v323
        %v421 = vunpack.c.l.b16 %v324
        %v422 = vunpack.c.l.b16 %v325
        %v423 = vunpack.c.l.b16 %v326
        %v424 = vunpack.c.l.b16 %v327
        %v425 = vunpack.c.l.b16 %v328
        %v426 = vunpack.c.l.b16 %v329
        %v427 = vpack.c.b16 %v412, %v411
        %v428 = vpack.c.b16 %v414, %v413
        %v429 = vpack.c.b16 %v416, %v415
        %v430 = vpack.c.b16 %v418, %v417
        %v431 = vpack.c.b16 %v420, %v419
        %v432 = vpack.c.b16 %v422, %v421
        %v433 = vpack.c.b16 %v424, %v423
        %v434 = vpack.c.b16 %v426, %v425
        %v441 = vunpack.c.l.b16 %v352
        %v442 = vunpack.c.l.b16 %v353
        %v443 = vunpack.c.l.b16 %v354
        %v444 = vunpack.c.l.b16 %v355
        %v445 = vunpack.c.l.b16 %v356
        %v446 = vunpack.c.l.b16 %v357
        %v447 = vpack.c.b16 %v442, %v441
        %v448 = vpack.c.b16 %v444, %v443
        %v449 = vpack.c.b16 %v446, %v445
        %vm453 = vcmask 392192
        %v455 = vsel %vm453, %v427, 0
        %v458 = vsel %vm453, %v428, 0
        %v461 = vsel %vm453, %v429, 0
        %v464 = vsel %vm453, %v430, 0
        %v467 = vsel %vm453, %v431, 0
        %v470 = vsel %vm453, %v432, 0
        %v473 = vsel %vm453, %v433, 0
        %v476 = vsel %vm453, %v434, 0
        %478 = vmatpush.bf16.msra.mxu0 0
        %479 = vmatpush.bf16.msra.mxu0 0
        %480 = vmatpush.bf16.msra.mxu0 0
        %481 = vmatpush.bf16.msra.mxu0 0
        %482 = vmatpush.bf16.msra.mxu0 0
        %483 = vmatpush.bf16.msra.mxu0 %v449
        %484 = vmatpush.bf16.msra.mxu0 %v448
        %485 = vmatpush.bf16.msra.mxu0 %v447
        %486 = vmatmul.bf16.gmra.mxu0 %v455
        %v487 = vpop.f32.mrf.mxu0
        %v488 = vadd.f32 0.0, %v487
        %v489 = vpop.f32.mrf.mxu0
        %v490 = vadd.f32 0.0, %v489
        %491 = vmatmul.bf16.gmra.mxu0 %v458
        %v492 = vpop.f32.mrf.mxu0
        %v493 = vadd.f32 0.0, %v492
        %v494 = vpop.f32.mrf.mxu0
        %v495 = vadd.f32 0.0, %v494
        %496 = vmatmul.bf16.gmra.mxu0 %v461
        %v497 = vpop.f32.mrf.mxu0
        %v498 = vadd.f32 0.0, %v497
        %v499 = vpop.f32.mrf.mxu0
        %v500 = vadd.f32 0.0, %v499
        %501 = vmatmul.bf16.gmra.mxu0 %v464
        %v502 = vpop.f32.mrf.mxu0
        %v503 = vadd.f32 0.0, %v502
        %v504 = vpop.f32.mrf.mxu0
        %v505 = vadd.f32 0.0, %v504
        %506 = vmatmul.bf16.gmra.mxu0 %v467
        %v507 = vpop.f32.mrf.mxu0
        %v508 = vadd.f32 0.0, %v507
        %v509 = vpop.f32.mrf.mxu0
        %v510 = vadd.f32 0.0, %v509
        %511 = vmatmul.bf16.gmra.mxu0 %v470
        %v512 = vpop.f32.mrf.mxu0
        %v513 = vadd.f32 0.0, %v512
        %v514 = vpop.f32.mrf.mxu0
        %v515 = vadd.f32 0.0, %v514
        %516 = vmatmul.bf16.gmra.mxu0 %v473
        %v517 = vpop.f32.mrf.mxu0
        %v518 = vadd.f32 0.0, %v517
        %v519 = vpop.f32.mrf.mxu0
        %v520 = vadd.f32 0.0, %v519
        %521 = vmatmul.bf16.gmra.mxu0 %v476
        %v522 = vpop.f32.mrf.mxu0
        %v523 = vadd.f32 0.0, %v522
        %v524 = vpop.f32.mrf.mxu0
        %v525 = vadd.f32 0.0, %v524
        %526 = vdwg.mxu0
        %v527 = vpack.c.bf16 %v393, %v391
        %v528 = vpack.c.bf16 %v490, %v488
        %v529 = vpack.c.bf16 %v495, %v493
        %v530 = vpack.c.bf16 %v500, %v498
        %v531 = vpack.c.bf16 %v505, %v503
        %v532 = vpack.c.bf16 %v510, %v508
        %v533 = vpack.c.bf16 %v515, %v513
        %v534 = vpack.c.bf16 %v520, %v518
        %v535 = vpack.c.bf16 %v525, %v523
        %vm536 = vcmask 64512
        %v538 = vsel %vm536, %v527, 0
        %v541 = vsel %vm536, %v528, 0
        %v544 = vsel %vm536, %v529, 0
        %v547 = vsel %vm536, %v530, 0
        %v550 = vsel %vm536, %v531, 0
        %v553 = vsel %vm536, %v532, 0
        %v556 = vsel %vm536, %v533, 0
        %v559 = vsel %vm536, %v534, 0
        %v562 = vsel %vm536, %v535, 0
        %564 = vmatpush.bf16.xpose.msra.mxu0 %v562
        %565 = vmatpush.bf16.xpose.msra.mxu0 %v559
        %566 = vmatpush.bf16.xpose.msra.mxu0 %v556
        %567 = vmatpush.bf16.xpose.msra.mxu0 %v553
        %568 = vmatpush.bf16.xpose.msra.mxu0 %v550
        %569 = vmatpush.bf16.xpose.msra.mxu0 %v547
        %570 = vmatpush.bf16.xpose.msra.mxu0 %v544
        %571 = vmatpush.bf16.xpose.msra.mxu0 %v541
        %572 = vmatmul.bf16.gmra.mxu0 %v538
        %v573 = vpop.f32.mrf.mxu0
        %v574 = vadd.f32 0.0, %v573
        %v575 = vpop.f32.mrf.mxu0
        %v576 = vadd.f32 0.0, %v575
        %577 = vdwg.mxu0
        %v578 = vsel %vm335, -1e+30, %v574
        %v579 = vsel %vm335, -1e+30, %v576
        %580 = vmax.xlane.f32.xlu0 %v578
        %v581 = vpop.xlane.xlu0 %580
        %582 = vmax.xlane.f32.xlu0 %v579
        %v583 = vpop.xlane.xlu0 %582
        %v584 = vsub.f32 %v578, %v581
        %v585 = vsub.f32 %v579, %v583
        %v586 = vmul.f32 %v584, 1.442695
        %v587 = vpow.pop %v586
        %v588 = vmul.f32 %v585, 1.442695
        %v589 = vpow.pop %v588
        %590 = vadd.xlane.f32.xlu0 %v587
        %v591 = vpop.xlane.xlu0 %590
        %592 = vadd.xlane.f32.xlu0 %v589
        %v593 = vpop.xlane.xlu0 %592
        %v594 = vrcp.pop %v591
        %v595 = vmul.f32 %v591, %v594
        %v596 = vsub.f32 1.0, %v595
        %v597 = vmul.f32 %v594, %v596
        %v598 = vadd.f32 %v594, %v597
        %vm599 = vweird.f32 %v591
        %vm600 = vweird.f32 %v594
        %vm601 = vmor %vm599, %vm600
        %v602 = vsel %vm601, %v594, %v598
        %v603 = vand.u32 2147483647, %v591
        %vm604 = vcmp.eq.f32.partialorder %v603, 8.507059e+37
        %v605 = vand.u32 %v591, 2147483648
        %v606 = vor.u32 1.1754944e-38, %v605
        %v607 = vsel %vm604, %v606, %v602
        %v608 = vrcp.pop %v593
        %v609 = vmul.f32 %v593, %v608
        %v610 = vsub.f32 1.0, %v609
        %v611 = vmul.f32 %v608, %v610
        %v612 = vadd.f32 %v608, %v611
        %vm613 = vweird.f32 %v593
        %vm614 = vweird.f32 %v608
        %vm615 = vmor %vm613, %vm614
        %v616 = vsel %vm615, %v608, %v612
        %v617 = vand.u32 2147483647, %v593
        %vm618 = vcmp.eq.f32.partialorder %v617, 8.507059e+37
        %v619 = vand.u32 %v593, 2147483648
        %v620 = vor.u32 1.1754944e-38, %v619
        %v621 = vsel %vm618, %v620, %v616
        %v622 = vmul.f32 %v587, %v607
        %v623 = vmul.f32 %v589, %v621
        %v624 = vpack.c.bf16 %v623, %v622
        %633 = vrot.lane.b32.xlu0 %v528, 120
        %v634 = vpop.permute.xlu0 %633
        %635 = vrot.lane.b32.xlu0 %v529, 120
        %v636 = vpop.permute.xlu0 %635
        %637 = vrot.lane.b32.xlu0 %v530, 120
        %v638 = vpop.permute.xlu0 %637
        %639 = vrot.lane.b32.xlu0 %v531, 120
        %v640 = vpop.permute.xlu0 %639
        %641 = vrot.lane.b32.xlu0 %v532, 120
        %v642 = vpop.permute.xlu0 %641
        %643 = vrot.lane.b32.xlu0 %v533, 120
        %v644 = vpop.permute.xlu0 %643
        %645 = vrot.lane.b32.xlu0 %v534, 120
        %v646 = vpop.permute.xlu0 %645
        %647 = vrot.lane.b32.xlu0 %v535, 120
        %v648 = vpop.permute.xlu0 %647
        %657 = vmatpush.bf16.msra.mxu0 %v648
        %658 = vmatpush.bf16.msra.mxu0 %v646
        %659 = vmatpush.bf16.msra.mxu0 %v644
        %660 = vmatpush.bf16.msra.mxu0 %v642
        %661 = vmatpush.bf16.msra.mxu0 %v640
        %662 = vmatpush.bf16.msra.mxu0 %v638
        %663 = vmatpush.bf16.msra.mxu0 %v636
        %664 = vmatpush.bf16.msra.mxu0 %v634
        %665 = vmatmul.bf16.gmra.mxu0 %v624
        %v666 = vpop.f32.mrf.mxu0
        %v667 = vadd.f32 0.0, %v666
        %v668 = vpop.f32.mrf.mxu0
        %v669 = vadd.f32 0.0, %v668
        %670 = vdwg.mxu0
        %v671 = vld [vmem:[#allocation2] sm:$0xff]
        %v672 = vld [vmem:[#allocation2 + $0x8] sm:$0xff]
        %v673 = vpack.c.bf16 %v669, %v667
        %v675 = vsel %vm536, %v673, 0
        %vm677 = vcmask 1043456
        %v679 = vsel %vm677, %v360, 0
        %681 = vmatpush.bf16.msra.mxu0 0
        %682 = vmatpush.bf16.msra.mxu0 0
        %683 = vmatpush.bf16.msra.mxu0 0
        %684 = vmatpush.bf16.msra.mxu0 0
        %685 = vmatpush.bf16.msra.mxu0 0
        %686 = vmatpush.bf16.msra.mxu0 0
        %687 = vmatpush.bf16.msra.mxu0 0
        %688 = vmatpush.bf16.msra.mxu0 %v679
        %689 = vmatmul.bf16.gmra.mxu0 %v675
        %v690 = vpop.f32.mrf.mxu0
        %v691 = vadd.f32 0.0, %v690
        %v692 = vpop.f32.mrf.mxu0
        %v693 = vadd.f32 0.0, %v692
        %694 = vdwg.mxu0
        %v695 = vadd.f32 %v671, %v691
        %v696 = vadd.f32 %v672, %v693
        %697 = vst.msk [vmem:[#allocation2] sm:$0xff] %vm330, %v695
        %698 = vst.msk [vmem:[#allocation2 + $0x8] sm:$0xff] %vm330, %v696
      $region49: #{tpu_custom_call.1} parent=43 // loop_footer
        %s341 = sadd.s32 1, %s337
      $region50: #{tpu_custom_call.1} parent=43 // loop_footer_branch
        %336 = sbr.rel target = $region46
      $region51: #{tpu_custom_call.1} parent=43 // loop_exit
        _
      %v699 = vld [vmem:[#allocation2] sm:$0xff]
      %v700 = vld [vmem:[#allocation2 + $0x8] sm:$0xff]
      %v701 = vld [vmem:[%s5] sm:$0x1]
      %v703 = vperm.slane %v701, 0
      %v705 = vadd.f32 %v699, %v703
      %v706 = vadd.f32 %v700, %v703
      %v707 = vunpack.c.l.bf16 %v312
      %v708 = vunpack.c.l.bf16 %v313
      %v709 = vadd.f32 %v705, %v707
      %v710 = vadd.f32 %v706, %v708
      %711 = vst.msk [vmem:[%s309] sm:$0xff] %vm330, %v709
      %712 = vst.msk [vmem:[%s309 + $0x8] sm:$0xff] %vm330, %v710
      %s713 = smul.u32 2, %s22
      %p714 = scmp.lt.s32.totalorder %s21, 1
      %s715 = scalar_select %p714, %s21, 1
      %p716 = scmp.lt.s32.totalorder %s713, 7
      %s717 = scalar_select %p716, %s713, 7
      %s718 = smul.addr %s715, 8
      %s719 = sadd.s32 %s717, %s718
      %s720 = smul.addr %s719, 8
      %s721 = scalar_lea.vmem %s6, %s720
      // Predicated region
      $region52: #{tpu_custom_call.1} parent=43 // pred_check
        %p722 = pneg %p187
      $region53: #{tpu_custom_call.1} parent=43 // pred_check_branch
        %724 = sbr.rel (%p722) target = $region55
      $region54: #{tpu_custom_call.1} parent=43 // pred_region
        %s725 = smul.u32 2, %s22
      $region55: #{tpu_custom_call.1} parent=43 // pred_fallthru
        _
    $region44: #{tpu_custom_call.1} parent=5 // pred_fallthru
      _
    %p726 = scmp.le.s32.totalorder 2, %s12
    // Predicated region
    $region56: #{tpu_custom_call.1} parent=5 // pred_check
      %p727 = pneg %p726
    $region57: #{tpu_custom_call.1} parent=5 // pred_check_branch
      %729 = sbr.rel (%p727) target = $region59
    $region58: #{tpu_custom_call.1} parent=5 // pred_region
      %s730 = ssub.s32 %s12, 2
      // Predicated region
      $region60: #{tpu_custom_call.1} parent=58 // pred_check
        %p731 = pneg %p193
      $region61: #{tpu_custom_call.1} parent=58 // pred_check_branch
        %733 = sbr.rel (%p731) target = $region63
      $region62: #{tpu_custom_call.1} parent=58 // pred_region
        %s734 = smul.u32 2, %s24
        %p735 = scmp.lt.s32.totalorder %s23, 1
        %s736 = scalar_select %p735, %s23, 1
        %p737 = scmp.lt.s32.totalorder %s734, 7
        %s738 = scalar_select %p737, %s734, 7
        %s739 = smul.addr %s736, 8
        %s740 = sadd.s32 %s738, %s739
        %s741 = smul.addr %s740, 8
        %s742 = scalar_lea.vmem %s6, %s741
      $region63: #{tpu_custom_call.1} parent=58 // pred_fallthru
        _
    $region59: #{tpu_custom_call.1} parent=5 // pred_fallthru
      _
  $region6: #{tpu_custom_call.1} parent=0 // loop_footer
    %s16 = sadd.s32 1, %s12
  $region7: #{tpu_custom_call.1} parent=0 // loop_footer_branch
    %11 = sbr.rel target = $region3
  $region8: #{tpu_custom_call.1} parent=0 // loop_exit
    _

</llo_original>
